<compile_context>
chip_gen: v6e
topology: v6e:2x2x1
jax: 0.10.0
libtpu: 0.0.40
codegen_flags: <defaults>
</compile_context>

<pallas_src>
import jax
import jax.numpy as jnp
from jax import lax
from jax.experimental import pallas as pl
from jax.experimental.pallas import tpu as pltpu


def _round_up(x: int, m: int) -> int:
    return ((x + m - 1) // m) * m


def ffn_kernel(x_ref, w1_ref, w2_ref, o_ref):
    # x_ref:  (tm, dim)      bf16
    # w1_ref: (hidden, dim)  bf16  (PyTorch Linear layout: out_features, in_features)
    # w2_ref: (dim, hidden)  bf16
    # o_ref:  (tm, dim)      out dtype (f32)
    #
    # h = x @ w1.T : contract x's last dim with w1's last dim -> no transposed
    # weight copy; the MXU consumes the native layout directly.
    h = lax.dot_general(
        x_ref[...], w1_ref[...],
        dimension_numbers=(((1,), (1,)), ((), ())),
        preferred_element_type=jnp.float32)             # (tm, hidden), f32 acc
    h = jnp.maximum(h, 0.0)                              # ReLU in f32 (v5e-safe VPU)
    out = lax.dot_general(
        h.astype(w2_ref.dtype), w2_ref[...],             # cast only at MXU input
        dimension_numbers=(((1,), (1,)), ((), ())),
        preferred_element_type=jnp.float32)              # (tm, dim), f32 acc
    o_ref[...] = out.astype(o_ref.dtype)


def feed_forward(x, w1, w2, *, tm=512):
    """x: (batch, seq, dim); w1: (hidden, dim); w2: (dim, hidden).

    Matches torch: w2(relu(w1(x))) with bias=False Linears (bf16 MXU inputs,
    f32 accumulation).
    """
    batch, seq, dim = x.shape
    hidden, dim_w1 = w1.shape
    assert dim_w1 == dim and w2.shape == (dim, hidden)
    # Keep lane dims MXU/vreg friendly. The module's defaults (1024, 768) satisfy this.
    assert dim % 128 == 0 and hidden % 128 == 0, "pad dim/hidden to multiples of 128"

    out_dtype = x.dtype
    out_bytes = jnp.dtype(out_dtype).itemsize
    M = batch * seq

    # Row tile: large enough to fill the MXU / amortize per-step overhead,
    # never larger than (8-aligned) M.
    tm = min(tm, _round_up(M, 8))
    M_pad = _round_up(M, tm)

    x2d = x.reshape(M, dim).astype(jnp.bfloat16)
    if M_pad != M:
        x2d = jnp.pad(x2d, ((0, M_pad - M), (0, 0)))

    # One-time dtype cast; weights keep their native PyTorch layout (no .T copies).
    w1b = w1.astype(jnp.bfloat16)
    w2b = w2.astype(jnp.bfloat16)

    grid = (M_pad // tm,)

    # Advisory cost estimate for the XLA scheduler (2 matmuls, 2*M*K*N each).
    cost = pl.CostEstimate(
        flops=4 * M_pad * dim * hidden,
        transcendentals=0,
        bytes_accessed=(M_pad * dim * 2                  # x (bf16)
                        + 2 * dim * hidden * 2           # both weights (bf16)
                        + M_pad * dim * out_bytes))      # output

    # VMEM budget: double-buffered x/out tiles + resident weights + f32 intermediate.
    vmem_need = (2 * tm * dim * 2                        # x tiles (bf16, 2 bufs)
                 + 2 * tm * dim * out_bytes              # out tiles (2 bufs)
                 + 2 * 2 * dim * hidden * 2              # weights (worst-case 2 bufs)
                 + tm * hidden * 4)                      # f32 intermediate
    vmem_limit = int(min(max(vmem_need + (4 << 20), 32 << 20), 100 << 20))

    out2d = pl.pallas_call(
        ffn_kernel,
        out_shape=jax.ShapeDtypeStruct((M_pad, dim), out_dtype),
        grid_spec=pltpu.PrefetchScalarGridSpec(
            num_scalar_prefetch=0,
            grid=grid,
            in_specs=[
                pl.BlockSpec((tm, dim), lambda i: (i, 0)),
                pl.BlockSpec((hidden, dim), lambda i: (0, 0)),   # resident weight
                pl.BlockSpec((dim, hidden), lambda i: (0, 0)),   # resident weight
            ],
            out_specs=pl.BlockSpec((tm, dim), lambda i: (i, 0)),
        ),
        compiler_params=pltpu.CompilerParams(
            dimension_semantics=("parallel",),
            vmem_limit_bytes=vmem_limit,
        ),
        cost_estimate=cost,
    )(x2d, w1b, w2b)

    return out2d[:M].reshape(batch, seq, dim)


if __name__ == "__main__":
    # Small shapes consistent with the position-wise FFN (dim/hidden as
    # MXU-friendly multiples of 128, matching the module's dim/hidden ratio).
    batch, seq, dim, hidden = 2, 16, 256, 512

    key = jax.random.PRNGKey(0)
    kx, k1, k2 = jax.random.split(key, 3)

    x = jax.random.normal(kx, (batch, seq, dim), dtype=jnp.float32)
    # Deterministic "Linear" weights, PyTorch layout (out_features, in_features).
    w1 = jax.random.normal(k1, (hidden, dim), dtype=jnp.float32) * 0.02
    w2 = jax.random.normal(k2, (dim, hidden), dtype=jnp.float32) * 0.02

    out = feed_forward(x, w1, w2)
    out = jax.block_until_ready(out)
    assert out.shape == (batch, seq, dim)

    # Reference with matching bf16 numerics (f32 accumulation).
    xb = x.reshape(-1, dim).astype(jnp.bfloat16)
    w1b, w2b = w1.astype(jnp.bfloat16), w2.astype(jnp.bfloat16)
    h = jnp.maximum(jnp.dot(xb, w1b.T, preferred_element_type=jnp.float32), 0.0)
    ref = jnp.dot(h.astype(jnp.bfloat16), w2b.T,
                  preferred_element_type=jnp.float32).reshape(batch, seq, dim)
    assert jnp.allclose(out, ref, atol=1e-2, rtol=1e-2)

    # Loose check against full-f32 torch semantics (bf16 rounding only).
    ref32 = jnp.maximum(x @ w1.T, 0.0) @ w2.T
    assert jnp.allclose(out, ref32, atol=5e-2, rtol=5e-2)

    print("KERNEL_OK")
</pallas_src>

<mosaic_0001>
module attributes {stable_mosaic.version = 11 : i64} {
  func.func @ffn_kernel(%arg0: i32, %arg1: memref<32x256xbf16, #tpu.memory_space<vmem>>, %arg2: memref<512x256xbf16, #tpu.memory_space<vmem>>, %arg3: memref<256x512xbf16, #tpu.memory_space<vmem>>, %arg4: memref<32x256xf32, #tpu.memory_space<vmem>>) attributes {dimension_semantics = [#tpu.dimension_semantics<parallel>], iteration_bounds = array<i64: 1>, scalar_prefetch = 0 : i64, scratch_operands = 0 : i64, tpu.core_type = #tpu.core_type<tc>, window_params = [{transform_indices = @transform_0, window_bounds = array<i64: 32, 256>}, {pipeline_mode = #tpu.pipeline_mode<synchronous>, transform_indices = @transform_1, window_bounds = array<i64: 512, 256>}, {pipeline_mode = #tpu.pipeline_mode<synchronous>, transform_indices = @transform_2, window_bounds = array<i64: 256, 512>}, {transform_indices = @transform_3, window_bounds = array<i64: 32, 256>}]} {
    %c0 = arith.constant 0 : index
    %c0_0 = arith.constant 0 : index
    %0 = vector.load %arg1[%c0, %c0_0] : memref<32x256xbf16, #tpu.memory_space<vmem>>, vector<32x256xbf16>
    %c0_1 = arith.constant 0 : index
    %c0_2 = arith.constant 0 : index
    %1 = vector.load %arg2[%c0_1, %c0_2] : memref<512x256xbf16, #tpu.memory_space<vmem>>, vector<512x256xbf16>
    %cst = arith.constant dense<0.000000e+00> : vector<32x512xf32>
    %2 = tpu.matmul %0, %1, %cst {dimension_numbers = #tpu.dot_dimension_numbers<[1], [1], [0], [0], [0, 0, 1, 0], [], []>} : vector<32x256xbf16>, vector<512x256xbf16>, vector<32x512xf32> -> vector<32x512xf32>
    %cst_3 = arith.constant 0.000000e+00 : f32
    %3 = vector.broadcast %cst_3 : f32 to vector<32x512xf32>
    %4 = arith.maximumf %2, %3 : vector<32x512xf32>
    %5 = arith.truncf %4 : vector<32x512xf32> to vector<32x512xbf16>
    %c0_4 = arith.constant 0 : index
    %c0_5 = arith.constant 0 : index
    %6 = vector.load %arg3[%c0_4, %c0_5] : memref<256x512xbf16, #tpu.memory_space<vmem>>, vector<256x512xbf16>
    %cst_6 = arith.constant dense<0.000000e+00> : vector<32x256xf32>
    %7 = tpu.matmul %5, %6, %cst_6 {dimension_numbers = #tpu.dot_dimension_numbers<[1], [1], [0], [0], [0, 0, 1, 0], [], []>} : vector<32x512xbf16>, vector<256x512xbf16>, vector<32x256xf32> -> vector<32x256xf32>
    %c0_7 = arith.constant 0 : index
    %c0_8 = arith.constant 0 : index
    %8 = vector.load %arg4[%c0_7, %c0_8] : memref<32x256xf32, #tpu.memory_space<vmem>>, vector<32x256xf32>
    tpu.vector_store %arg4[%c0_7, %c0_8], %7 {strides = array<i32>} : memref<32x256xf32, #tpu.memory_space<vmem>>, vector<32x256xf32>,
    return
  }
  func.func @transform_0(%arg0: i32) -> (i32, i32) {
    %c0_i32 = arith.constant 0 : i32
    %c0_i32_0 = arith.constant 0 : i32
    return %arg0, %c0_i32 : i32, i32
  }
  func.func @transform_1(%arg0: i32) -> (i32, i32) {
    %c0_i32 = arith.constant 0 : i32
    %c0_i32_0 = arith.constant 0 : i32
    %c0_i32_1 = arith.constant 0 : i32
    return %c0_i32, %c0_i32_0 : i32, i32
  }
  func.func @transform_2(%arg0: i32) -> (i32, i32) {
    %c0_i32 = arith.constant 0 : i32
    %c0_i32_0 = arith.constant 0 : i32
    %c0_i32_1 = arith.constant 0 : i32
    return %c0_i32, %c0_i32_0 : i32, i32
  }
  func.func @transform_3(%arg0: i32) -> (i32, i32) {
    %c0_i32 = arith.constant 0 : i32
    %c0_i32_0 = arith.constant 0 : i32
    return %arg0, %c0_i32 : i32, i32
  }
}

</mosaic_0001>

<llo_original>
// kernel: tpu_custom_call.1
$region0: #{tpu_custom_call.1}
  #allocation0 [shape = 'u32[]', space=smem, size = 0x4, offset = 0x4, fixed_abs, tag = 'smem constant byte address 0x4 - core index']
  #allocation1 [shape = 'u32[144,128]{1,0:T(1,128)}', space=vmem, size = 0x12000, scoped, tag = 'internal scratch']
  %s0 = inlined_call_operand.hbm [shape: bf16[32,256], index: 0, kind: input, shape index: {}]
  %s1 = inlined_call_operand.hbm [shape: bf16[512,256], index: 1, kind: input, shape index: {}]
  %s2 = inlined_call_operand.hbm [shape: bf16[256,512], index: 2, kind: input, shape index: {}]
  %s3 = inlined_call_operand.hbm [shape: f32[32,256], index: 3, kind: output, shape index: {}]
  %s4 = sld [smem:[#allocation0]]
  $region34: #{tpu_custom_call.1} parent=0
    _
  %s6 = ssub.s32 1, %s4
  %s7 = scalar_select 0, %s6, %s4
  $region1: #{tpu_custom_call.1} parent=0
    #allocation2 [shape = 'u8[16384]{0}', space=vmem, size = 0x4000, scoped, tag = 'input window, operand 0, single buffered']
    #allocation3 [shape = 's32[1]{0}', space=sflag, size = 0x4, scoped, tag = 'scoped memory for tpu_custom_call.1']
    #allocation4 [shape = 's32[1]{0}', space=sflag, size = 0x4, scoped, tag = 'scoped memory for tpu_custom_call.1']
    #allocation5 [shape = 'u8[262144]{0}', space=vmem, size = 0x40000, scoped, tag = 'input window, operand 1, single buffered']
    #allocation6 [shape = 's32[1]{0}', space=sflag, size = 0x4, scoped, tag = 'scoped memory for tpu_custom_call.1']
    #allocation7 [shape = 'u8[262144]{0}', space=vmem, size = 0x40000, scoped, tag = 'input window, operand 2, single buffered']
    #allocation8 [shape = 'u8[32768]{0}', space=vmem, size = 0x8000, scoped, tag = 'output window, operand 0, single buffered']
    %8 = vsyncpa [#allocation3], 0
    %9 = vsyncpa [#allocation6], 0
    %10 = vsyncpa [#allocation4], 0
    // Predicated region
    $region2: #{tpu_custom_call.1} parent=1 // pred_check
      _
    $region3: #{tpu_custom_call.1} parent=1 // pred_check_branch
      %12 = sbr.rel (0) target = $region5
    $region4: #{tpu_custom_call.1} parent=1 // pred_region
      %s14 = ssub.s32 512, 512
      %15 = vsyncadd [#allocation3], %s14
      %s16 = sshll.u32 [#allocation2], 4
      %s17 = int_to_ptr.vmem [resolvable:$true] %s16
      %22 = dma.hbm_to_vmem [thread:$0]  %s0, 512, %s17, [#allocation3], 128, 128, 8
    $region5: #{tpu_custom_call.1} parent=1 // pred_fallthru
      _
    // Predicated region
    $region6: #{tpu_custom_call.1} parent=1 // pred_check
      _
    $region7: #{tpu_custom_call.1} parent=1 // pred_check_branch
      %24 = sbr.rel (0) target = $region9
    $region8: #{tpu_custom_call.1} parent=1 // pred_region
      %s26 = ssub.s32 8192, 8192
      %27 = vsyncadd [#allocation6], %s26
      %s28 = sshll.u32 [#allocation5], 4
      %s29 = int_to_ptr.vmem [resolvable:$true] %s28
      %34 = dma.hbm_to_vmem [thread:$0]  %s1, 8192, %s29, [#allocation6], 128, 128, 8
    $region9: #{tpu_custom_call.1} parent=1 // pred_fallthru
      _
    // Predicated region
    $region10: #{tpu_custom_call.1} parent=1 // pred_check
      _
    $region11: #{tpu_custom_call.1} parent=1 // pred_check_branch
      %36 = sbr.rel (0) target = $region13
    $region12: #{tpu_custom_call.1} parent=1 // pred_region
      %s38 = ssub.s32 8192, 8192
      %39 = vsyncadd [#allocation6], %s38
      %s40 = sshll.u32 [#allocation7], 4
      %s41 = int_to_ptr.vmem [resolvable:$true] %s40
      %46 = dma.hbm_to_vmem [thread:$0]  %s2, 8192, %s41, [#allocation6], 256, 256, 16
    $region13: #{tpu_custom_call.1} parent=1 // pred_fallthru
      _
    // Predicated region
    $region14: #{tpu_custom_call.1} parent=1 // pred_check
      _
    $region15: #{tpu_custom_call.1} parent=1 // pred_check_branch
      %48 = sbr.rel (0) target = $region17
    $region16: #{tpu_custom_call.1} parent=1 // pred_region
      %49 = dma.done [#allocation3], 512
    $region17: #{tpu_custom_call.1} parent=1 // pred_fallthru
      _
    // Predicated region
    $region18: #{tpu_custom_call.1} parent=1 // pred_check
      _
    $region19: #{tpu_custom_call.1} parent=1 // pred_check_branch
      %51 = sbr.rel (0) target = $region21
    $region20: #{tpu_custom_call.1} parent=1 // pred_region
      %52 = dma.done [#allocation6], 8192
    $region21: #{tpu_custom_call.1} parent=1 // pred_fallthru
      _
    // Predicated region
    $region22: #{tpu_custom_call.1} parent=1 // pred_check
      _
    $region23: #{tpu_custom_call.1} parent=1 // pred_check_branch
      %54 = sbr.rel (0) target = $region25
    $region24: #{tpu_custom_call.1} parent=1 // pred_region
      %55 = dma.done [#allocation6], 8192
    $region25: #{tpu_custom_call.1} parent=1 // pred_fallthru
      _
    %v56 = vld [vmem:[#allocation2] sm:$0xff]
    %v57 = vld [vmem:[#allocation2 + $0x8] sm:$0xff]
    %v58 = vld [vmem:[#allocation2 + $0x10] sm:$0xff]
    %v59 = vld [vmem:[#allocation2 + $0x18] sm:$0xff]
    %v60 = vld [vmem:[#allocation5] sm:$0xff]
    %v61 = vld [vmem:[#allocation5 + $0x8] sm:$0xff]
    %v62 = vld [vmem:[#allocation5 + $0x10] sm:$0xff]
    %v63 = vld [vmem:[#allocation5 + $0x18] sm:$0xff]
    %v64 = vld [vmem:[#allocation5 + $0x20] sm:$0xff]
    %v65 = vld [vmem:[#allocation5 + $0x28] sm:$0xff]
    %v66 = vld [vmem:[#allocation5 + $0x30] sm:$0xff]
    %v67 = vld [vmem:[#allocation5 + $0x38] sm:$0xff]
    %v68 = vld [vmem:[#allocation5 + $0x40] sm:$0xff]
    %v69 = vld [vmem:[#allocation5 + $0x48] sm:$0xff]
    %v70 = vld [vmem:[#allocation5 + $0x50] sm:$0xff]
    %v71 = vld [vmem:[#allocation5 + $0x58] sm:$0xff]
    %v72 = vld [vmem:[#allocation5 + $0x60] sm:$0xff]
    %v73 = vld [vmem:[#allocation5 + $0x68] sm:$0xff]
    %v74 = vld [vmem:[#allocation5 + $0x70] sm:$0xff]
    %v75 = vld [vmem:[#allocation5 + $0x78] sm:$0xff]
    %v76 = vld [vmem:[#allocation5 + $0x80] sm:$0xff]
    %v77 = vld [vmem:[#allocation5 + $0x88] sm:$0xff]
    %v78 = vld [vmem:[#allocation5 + $0x90] sm:$0xff]
    %v79 = vld [vmem:[#allocation5 + $0x98] sm:$0xff]
    %v80 = vld [vmem:[#allocation5 + $0xa0] sm:$0xff]
    %v81 = vld [vmem:[#allocation5 + $0xa8] sm:$0xff]
    %v82 = vld [vmem:[#allocation5 + $0xb0] sm:$0xff]
    %v83 = vld [vmem:[#allocation5 + $0xb8] sm:$0xff]
    %v84 = vld [vmem:[#allocation5 + $0xc0] sm:$0xff]
    %v85 = vld [vmem:[#allocation5 + $0xc8] sm:$0xff]
    %v86 = vld [vmem:[#allocation5 + $0xd0] sm:$0xff]
    %v87 = vld [vmem:[#allocation5 + $0xd8] sm:$0xff]
    %v88 = vld [vmem:[#allocation5 + $0xe0] sm:$0xff]
    %v89 = vld [vmem:[#allocation5 + $0xe8] sm:$0xff]
    %v90 = vld [vmem:[#allocation5 + $0xf0] sm:$0xff]
    %v91 = vld [vmem:[#allocation5 + $0xf8] sm:$0xff]
    %v92 = vld [vmem:[#allocation5 + $0x100] sm:$0xff]
    %v93 = vld [vmem:[#allocation5 + $0x108] sm:$0xff]
    %v94 = vld [vmem:[#allocation5 + $0x110] sm:$0xff]
    %v95 = vld [vmem:[#allocation5 + $0x118] sm:$0xff]
    %v96 = vld [vmem:[#allocation5 + $0x120] sm:$0xff]
    %v97 = vld [vmem:[#allocation5 + $0x128] sm:$0xff]
    %v98 = vld [vmem:[#allocation5 + $0x130] sm:$0xff]
    %v99 = vld [vmem:[#allocation5 + $0x138] sm:$0xff]
    %v100 = vld [vmem:[#allocation5 + $0x140] sm:$0xff]
    %v101 = vld [vmem:[#allocation5 + $0x148] sm:$0xff]
    %v102 = vld [vmem:[#allocation5 + $0x150] sm:$0xff]
    %v103 = vld [vmem:[#allocation5 + $0x158] sm:$0xff]
    %v104 = vld [vmem:[#allocation5 + $0x160] sm:$0xff]
    %v105 = vld [vmem:[#allocation5 + $0x168] sm:$0xff]
    %v106 = vld [vmem:[#allocation5 + $0x170] sm:$0xff]
    %v107 = vld [vmem:[#allocation5 + $0x178] sm:$0xff]
    %v108 = vld [vmem:[#allocation5 + $0x180] sm:$0xff]
    %v109 = vld [vmem:[#allocation5 + $0x188] sm:$0xff]
    %v110 = vld [vmem:[#allocation5 + $0x190] sm:$0xff]
    %v111 = vld [vmem:[#allocation5 + $0x198] sm:$0xff]
    %v112 = vld [vmem:[#allocation5 + $0x1a0] sm:$0xff]
    %v113 = vld [vmem:[#allocation5 + $0x1a8] sm:$0xff]
    %v114 = vld [vmem:[#allocation5 + $0x1b0] sm:$0xff]
    %v115 = vld [vmem:[#allocation5 + $0x1b8] sm:$0xff]
    %v116 = vld [vmem:[#allocation5 + $0x1c0] sm:$0xff]
    %v117 = vld [vmem:[#allocation5 + $0x1c8] sm:$0xff]
    %v118 = vld [vmem:[#allocation5 + $0x1d0] sm:$0xff]
    %v119 = vld [vmem:[#allocation5 + $0x1d8] sm:$0xff]
    %v120 = vld [vmem:[#allocation5 + $0x1e0] sm:$0xff]
    %v121 = vld [vmem:[#allocation5 + $0x1e8] sm:$0xff]
    %v122 = vld [vmem:[#allocation5 + $0x1f0] sm:$0xff]
    %v123 = vld [vmem:[#allocation5 + $0x1f8] sm:$0xff]
    %v128 = vunpack.c.l.b16 %v56
    %v129 = vunpack.c.h.b16 %v56
    %v130 = vunpack.c.l.b16 %v57
    %v131 = vunpack.c.h.b16 %v57
    %v132 = vunpack.c.l.b16 %v58
    %v133 = vunpack.c.h.b16 %v58
    %v134 = vunpack.c.l.b16 %v59
    %v135 = vunpack.c.h.b16 %v59
    %v136 = vpack.c.b16 %v130, %v128
    %v137 = vpack.c.b16 %v131, %v129
    %v138 = vpack.c.b16 %v134, %v132
    %v139 = vpack.c.b16 %v135, %v133
    %v208 = vunpack.c.l.b16 %v60
    %v209 = vunpack.c.h.b16 %v60
    %v210 = vunpack.c.l.b16 %v61
    %v211 = vunpack.c.h.b16 %v61
    %v212 = vunpack.c.l.b16 %v62
    %v213 = vunpack.c.h.b16 %v62
    %v214 = vunpack.c.l.b16 %v63
    %v215 = vunpack.c.h.b16 %v63
    %v216 = vunpack.c.l.b16 %v64
    %v217 = vunpack.c.h.b16 %v64
    %v218 = vunpack.c.l.b16 %v65
    %v219 = vunpack.c.h.b16 %v65
    %v220 = vunpack.c.l.b16 %v66
    %v221 = vunpack.c.h.b16 %v66
    %v222 = vunpack.c.l.b16 %v67
    %v223 = vunpack.c.h.b16 %v67
    %v224 = vunpack.c.l.b16 %v68
    %v225 = vunpack.c.h.b16 %v68
    %v226 = vunpack.c.l.b16 %v69
    %v227 = vunpack.c.h.b16 %v69
    %v228 = vunpack.c.l.b16 %v70
    %v229 = vunpack.c.h.b16 %v70
    %v230 = vunpack.c.l.b16 %v71
    %v231 = vunpack.c.h.b16 %v71
    %v232 = vunpack.c.l.b16 %v72
    %v233 = vunpack.c.h.b16 %v72
    %v234 = vunpack.c.l.b16 %v73
    %v235 = vunpack.c.h.b16 %v73
    %v236 = vunpack.c.l.b16 %v74
    %v237 = vunpack.c.h.b16 %v74
    %v238 = vunpack.c.l.b16 %v75
    %v239 = vunpack.c.h.b16 %v75
    %v240 = vunpack.c.l.b16 %v76
    %v241 = vunpack.c.h.b16 %v76
    %v242 = vunpack.c.l.b16 %v77
    %v243 = vunpack.c.h.b16 %v77
    %v244 = vunpack.c.l.b16 %v78
    %v245 = vunpack.c.h.b16 %v78
    %v246 = vunpack.c.l.b16 %v79
    %v247 = vunpack.c.h.b16 %v79
    %v248 = vunpack.c.l.b16 %v80
    %v249 = vunpack.c.h.b16 %v80
    %v250 = vunpack.c.l.b16 %v81
    %v251 = vunpack.c.h.b16 %v81
    %v252 = vunpack.c.l.b16 %v82
    %v253 = vunpack.c.h.b16 %v82
    %v254 = vunpack.c.l.b16 %v83
    %v255 = vunpack.c.h.b16 %v83
    %v256 = vunpack.c.l.b16 %v84
    %v257 = vunpack.c.h.b16 %v84
    %v258 = vunpack.c.l.b16 %v85
    %v259 = vunpack.c.h.b16 %v85
    %v260 = vunpack.c.l.b16 %v86
    %v261 = vunpack.c.h.b16 %v86
    %v262 = vunpack.c.l.b16 %v87
    %v263 = vunpack.c.h.b16 %v87
    %v264 = vunpack.c.l.b16 %v88
    %v265 = vunpack.c.h.b16 %v88
    %v266 = vunpack.c.l.b16 %v89
    %v267 = vunpack.c.h.b16 %v89
    %v268 = vunpack.c.l.b16 %v90
    %v269 = vunpack.c.h.b16 %v90
    %v270 = vunpack.c.l.b16 %v91
    %v271 = vunpack.c.h.b16 %v91
    %v272 = vunpack.c.l.b16 %v92
    %v273 = vunpack.c.h.b16 %v92
    %v274 = vunpack.c.l.b16 %v93
    %v275 = vunpack.c.h.b16 %v93
    %v276 = vunpack.c.l.b16 %v94
    %v277 = vunpack.c.h.b16 %v94
    %v278 = vunpack.c.l.b16 %v95
    %v279 = vunpack.c.h.b16 %v95
    %v280 = vunpack.c.l.b16 %v96
    %v281 = vunpack.c.h.b16 %v96
    %v282 = vunpack.c.l.b16 %v97
    %v283 = vunpack.c.h.b16 %v97
    %v284 = vunpack.c.l.b16 %v98
    %v285 = vunpack.c.h.b16 %v98
    %v286 = vunpack.c.l.b16 %v99
    %v287 = vunpack.c.h.b16 %v99
    %v288 = vunpack.c.l.b16 %v100
    %v289 = vunpack.c.h.b16 %v100
    %v290 = vunpack.c.l.b16 %v101
    %v291 = vunpack.c.h.b16 %v101
    %v292 = vunpack.c.l.b16 %v102
    %v293 = vunpack.c.h.b16 %v102
    %v294 = vunpack.c.l.b16 %v103
    %v295 = vunpack.c.h.b16 %v103
    %v296 = vunpack.c.l.b16 %v104
    %v297 = vunpack.c.h.b16 %v104
    %v298 = vunpack.c.l.b16 %v105
    %v299 = vunpack.c.h.b16 %v105
    %v300 = vunpack.c.l.b16 %v106
    %v301 = vunpack.c.h.b16 %v106
    %v302 = vunpack.c.l.b16 %v107
    %v303 = vunpack.c.h.b16 %v107
    %v304 = vunpack.c.l.b16 %v108
    %v305 = vunpack.c.h.b16 %v108
    %v306 = vunpack.c.l.b16 %v109
    %v307 = vunpack.c.h.b16 %v109
    %v308 = vunpack.c.l.b16 %v110
    %v309 = vunpack.c.h.b16 %v110
    %v310 = vunpack.c.l.b16 %v111
    %v311 = vunpack.c.h.b16 %v111
    %v312 = vunpack.c.l.b16 %v112
    %v313 = vunpack.c.h.b16 %v112
    %v314 = vunpack.c.l.b16 %v113
    %v315 = vunpack.c.h.b16 %v113
    %v316 = vunpack.c.l.b16 %v114
    %v317 = vunpack.c.h.b16 %v114
    %v318 = vunpack.c.l.b16 %v115
    %v319 = vunpack.c.h.b16 %v115
    %v320 = vunpack.c.l.b16 %v116
    %v321 = vunpack.c.h.b16 %v116
    %v322 = vunpack.c.l.b16 %v117
    %v323 = vunpack.c.h.b16 %v117
    %v324 = vunpack.c.l.b16 %v118
    %v325 = vunpack.c.h.b16 %v118
    %v326 = vunpack.c.l.b16 %v119
    %v327 = vunpack.c.h.b16 %v119
    %v328 = vunpack.c.l.b16 %v120
    %v329 = vunpack.c.h.b16 %v120
    %v330 = vunpack.c.l.b16 %v121
    %v331 = vunpack.c.h.b16 %v121
    %v332 = vunpack.c.l.b16 %v122
    %v333 = vunpack.c.h.b16 %v122
    %v334 = vunpack.c.l.b16 %v123
    %v335 = vunpack.c.h.b16 %v123
    %v336 = vpack.c.b16 %v210, %v208
    %v337 = vpack.c.b16 %v211, %v209
    %v338 = vpack.c.b16 %v214, %v212
    %v339 = vpack.c.b16 %v215, %v213
    %v340 = vpack.c.b16 %v218, %v216
    %v341 = vpack.c.b16 %v219, %v217
    %v342 = vpack.c.b16 %v222, %v220
    %v343 = vpack.c.b16 %v223, %v221
    %v344 = vpack.c.b16 %v226, %v224
    %v345 = vpack.c.b16 %v227, %v225
    %v346 = vpack.c.b16 %v230, %v228
    %v347 = vpack.c.b16 %v231, %v229
    %v348 = vpack.c.b16 %v234, %v232
    %v349 = vpack.c.b16 %v235, %v233
    %v350 = vpack.c.b16 %v238, %v236
    %v351 = vpack.c.b16 %v239, %v237
    %v352 = vpack.c.b16 %v242, %v240
    %v353 = vpack.c.b16 %v243, %v241
    %v354 = vpack.c.b16 %v246, %v244
    %v355 = vpack.c.b16 %v247, %v245
    %v356 = vpack.c.b16 %v250, %v248
    %v357 = vpack.c.b16 %v251, %v249
    %v358 = vpack.c.b16 %v254, %v252
    %v359 = vpack.c.b16 %v255, %v253
    %v360 = vpack.c.b16 %v258, %v256
    %v361 = vpack.c.b16 %v259, %v257
    %v362 = vpack.c.b16 %v262, %v260
    %v363 = vpack.c.b16 %v263, %v261
    %v364 = vpack.c.b16 %v266, %v264
    %v365 = vpack.c.b16 %v267, %v265
    %v366 = vpack.c.b16 %v270, %v268
    %v367 = vpack.c.b16 %v271, %v269
    %v368 = vpack.c.b16 %v274, %v272
    %v369 = vpack.c.b16 %v275, %v273
    %v370 = vpack.c.b16 %v278, %v276
    %v371 = vpack.c.b16 %v279, %v277
    %v372 = vpack.c.b16 %v282, %v280
    %v373 = vpack.c.b16 %v283, %v281
    %v374 = vpack.c.b16 %v286, %v284
    %v375 = vpack.c.b16 %v287, %v285
    %v376 = vpack.c.b16 %v290, %v288
    %v377 = vpack.c.b16 %v291, %v289
    %v378 = vpack.c.b16 %v294, %v292
    %v379 = vpack.c.b16 %v295, %v293
    %v380 = vpack.c.b16 %v298, %v296
    %v381 = vpack.c.b16 %v299, %v297
    %v382 = vpack.c.b16 %v302, %v300
    %v383 = vpack.c.b16 %v303, %v301
    %v384 = vpack.c.b16 %v306, %v304
    %v385 = vpack.c.b16 %v307, %v305
    %v386 = vpack.c.b16 %v310, %v308
    %v387 = vpack.c.b16 %v311, %v309
    %v388 = vpack.c.b16 %v314, %v312
    %v389 = vpack.c.b16 %v315, %v313
    %v390 = vpack.c.b16 %v318, %v316
    %v391 = vpack.c.b16 %v319, %v317
    %v392 = vpack.c.b16 %v322, %v320
    %v393 = vpack.c.b16 %v323, %v321
    %v394 = vpack.c.b16 %v326, %v324
    %v395 = vpack.c.b16 %v327, %v325
    %v396 = vpack.c.b16 %v330, %v328
    %v397 = vpack.c.b16 %v331, %v329
    %v398 = vpack.c.b16 %v334, %v332
    %v399 = vpack.c.b16 %v335, %v333
    %464 = vmatprep.subr.bf16.mxu0 %v351
    %465 = vmatpush1.bf16.xpose.msra.mxu0 %v350
    %466 = vmatprep.subr.bf16.mxu0 %v349
    %467 = vmatpush1.bf16.xpose.msra.mxu0 %v348
    %468 = vmatprep.subr.bf16.mxu0 %v347
    %469 = vmatpush1.bf16.xpose.msra.mxu0 %v346
    %470 = vmatprep.subr.bf16.mxu0 %v345
    %471 = vmatpush1.bf16.xpose.msra.mxu0 %v344
    %472 = vmatprep.subr.bf16.mxu0 %v343
    %473 = vmatpush1.bf16.xpose.msra.mxu0 %v342
    %474 = vmatprep.subr.bf16.mxu0 %v341
    %475 = vmatpush1.bf16.xpose.msra.mxu0 %v340
    %476 = vmatprep.subr.bf16.mxu0 %v339
    %477 = vmatpush1.bf16.xpose.msra.mxu0 %v338
    %478 = vmatprep.subr.bf16.mxu0 %v337
    %479 = vmatpush1.bf16.xpose.msra.mxu0 %v336
    %480 = vmatprep.subr.bf16.mxu0 %v367
    %481 = vmatpush2.bf16.xpose.msra.mxu0 %v366
    %482 = vmatprep.subr.bf16.mxu0 %v365
    %483 = vmatpush2.bf16.xpose.msra.mxu0 %v364
    %484 = vmatprep.subr.bf16.mxu0 %v363
    %485 = vmatpush2.bf16.xpose.msra.mxu0 %v362
    %486 = vmatprep.subr.bf16.mxu0 %v361
    %487 = vmatpush2.bf16.xpose.msra.mxu0 %v360
    %488 = vmatprep.subr.bf16.mxu0 %v359
    %489 = vmatpush2.bf16.xpose.msra.mxu0 %v358
    %490 = vmatprep.subr.bf16.mxu0 %v357
    %491 = vmatpush2.bf16.xpose.msra.mxu0 %v356
    %492 = vmatprep.subr.bf16.mxu0 %v355
    %493 = vmatpush2.bf16.xpose.msra.mxu0 %v354
    %494 = vmatprep.subr.bf16.mxu0 %v353
    %495 = vmatpush2.bf16.xpose.msra.mxu0 %v352
    %496 = vmatprep.mubr.bf16.mxu0 %v137
    %497 = vmatmul.mubr.bf16.gmra.mxu0 %v136
    %v498 = vpop.f32.mrf.mxu0
    %v499 = vadd.f32 0.0, %v498
    %v500 = vpop.f32.mrf.mxu0
    %v501 = vadd.f32 0.0, %v500
    %v502 = vpop.f32.mrf.mxu0
    %v503 = vadd.f32 0.0, %v502
    %v504 = vpop.f32.mrf.mxu0
    %v505 = vadd.f32 0.0, %v504
    %506 = vmatprep.mubr.bf16.mxu0 %v139
    %507 = vmatmul.mubr.bf16.gmra.mxu0 %v138
    %v508 = vpop.f32.mrf.mxu0
    %v509 = vadd.f32 0.0, %v508
    %v510 = vpop.f32.mrf.mxu0
    %v511 = vadd.f32 0.0, %v510
    %v512 = vpop.f32.mrf.mxu0
    %v513 = vadd.f32 0.0, %v512
    %v514 = vpop.f32.mrf.mxu0
    %v515 = vadd.f32 0.0, %v514
    %516 = vdwg.mxu0
    %517 = vmatprep.subr.bf16.mxu0 %v383
    %518 = vmatpush1.bf16.xpose.msra.mxu0 %v382
    %519 = vmatprep.subr.bf16.mxu0 %v381
    %520 = vmatpush1.bf16.xpose.msra.mxu0 %v380
    %521 = vmatprep.subr.bf16.mxu0 %v379
    %522 = vmatpush1.bf16.xpose.msra.mxu0 %v378
    %523 = vmatprep.subr.bf16.mxu0 %v377
    %524 = vmatpush1.bf16.xpose.msra.mxu0 %v376
    %525 = vmatprep.subr.bf16.mxu0 %v375
    %526 = vmatpush1.bf16.xpose.msra.mxu0 %v374
    %527 = vmatprep.subr.bf16.mxu0 %v373
    %528 = vmatpush1.bf16.xpose.msra.mxu0 %v372
    %529 = vmatprep.subr.bf16.mxu0 %v371
    %530 = vmatpush1.bf16.xpose.msra.mxu0 %v370
    %531 = vmatprep.subr.bf16.mxu0 %v369
    %532 = vmatpush1.bf16.xpose.msra.mxu0 %v368
    %533 = vmatprep.subr.bf16.mxu0 %v399
    %534 = vmatpush2.bf16.xpose.msra.mxu0 %v398
    %535 = vmatprep.subr.bf16.mxu0 %v397
    %536 = vmatpush2.bf16.xpose.msra.mxu0 %v396
    %537 = vmatprep.subr.bf16.mxu0 %v395
    %538 = vmatpush2.bf16.xpose.msra.mxu0 %v394
    %539 = vmatprep.subr.bf16.mxu0 %v393
    %540 = vmatpush2.bf16.xpose.msra.mxu0 %v392
    %541 = vmatprep.subr.bf16.mxu0 %v391
    %542 = vmatpush2.bf16.xpose.msra.mxu0 %v390
    %543 = vmatprep.subr.bf16.mxu0 %v389
    %544 = vmatpush2.bf16.xpose.msra.mxu0 %v388
    %545 = vmatprep.subr.bf16.mxu0 %v387
    %546 = vmatpush2.bf16.xpose.msra.mxu0 %v386
    %547 = vmatprep.subr.bf16.mxu0 %v385
    %548 = vmatpush2.bf16.xpose.msra.mxu0 %v384
    %549 = vmatprep.mubr.bf16.mxu0 %v137
    %550 = vmatmul.mubr.bf16.gmra.mxu0 %v136
    %v551 = vpop.f32.mrf.mxu0
    %v552 = vadd.f32 0.0, %v551
    %v553 = vpop.f32.mrf.mxu0
    %v554 = vadd.f32 0.0, %v553
    %v555 = vpop.f32.mrf.mxu0
    %v556 = vadd.f32 0.0, %v555
    %v557 = vpop.f32.mrf.mxu0
    %v558 = vadd.f32 0.0, %v557
    %559 = vmatprep.mubr.bf16.mxu0 %v139
    %560 = vmatmul.mubr.bf16.gmra.mxu0 %v138
    %v561 = vpop.f32.mrf.mxu0
    %v562 = vadd.f32 0.0, %v561
    %v563 = vpop.f32.mrf.mxu0
    %v564 = vadd.f32 0.0, %v563
    %v565 = vpop.f32.mrf.mxu0
    %v566 = vadd.f32 0.0, %v565
    %v567 = vpop.f32.mrf.mxu0
    %v568 = vadd.f32 0.0, %v567
    %569 = vdwg.mxu0
    %v570 = vmax.f32 %v499, 0.0
    %v571 = vmax.f32 %v501, 0.0
    %v572 = vmax.f32 %v552, 0.0
    %v573 = vmax.f32 %v554, 0.0
    %v574 = vmax.f32 %v503, 0.0
    %v575 = vmax.f32 %v505, 0.0
    %v576 = vmax.f32 %v556, 0.0
    %v577 = vmax.f32 %v558, 0.0
    %v578 = vmax.f32 %v509, 0.0
    %v579 = vmax.f32 %v511, 0.0
    %v580 = vmax.f32 %v562, 0.0
    %v581 = vmax.f32 %v564, 0.0
    %v582 = vmax.f32 %v513, 0.0
    %v583 = vmax.f32 %v515, 0.0
    %v584 = vmax.f32 %v566, 0.0
    %v585 = vmax.f32 %v568, 0.0
    %v586 = vpack.c.bf16 %v574, %v570
    %v587 = vpack.c.bf16 %v575, %v571
    %v588 = vpack.c.bf16 %v576, %v572
    %v589 = vpack.c.bf16 %v577, %v573
    %v590 = vpack.c.bf16 %v582, %v578
    %v591 = vpack.c.bf16 %v583, %v579
    %v592 = vpack.c.bf16 %v584, %v580
    %v593 = vpack.c.bf16 %v585, %v581
    %v594 = vld [vmem:[#allocation7] sm:$0xff]
    %v595 = vld [vmem:[#allocation7 + $0x8] sm:$0xff]
    %v596 = vld [vmem:[#allocation7 + $0x10] sm:$0xff]
    %v597 = vld [vmem:[#allocation7 + $0x18] sm:$0xff]
    %v598 = vld [vmem:[#allocation7 + $0x20] sm:$0xff]
    %v599 = vld [vmem:[#allocation7 + $0x28] sm:$0xff]
    %v600 = vld [vmem:[#allocation7 + $0x30] sm:$0xff]
    %v601 = vld [vmem:[#allocation7 + $0x38] sm:$0xff]
    %v602 = vld [vmem:[#allocation7 + $0x40] sm:$0xff]
    %v603 = vld [vmem:[#allocation7 + $0x48] sm:$0xff]
    %v604 = vld [vmem:[#allocation7 + $0x50] sm:$0xff]
    %v605 = vld [vmem:[#allocation7 + $0x58] sm:$0xff]
    %v606 = vld [vmem:[#allocation7 + $0x60] sm:$0xff]
    %v607 = vld [vmem:[#allocation7 + $0x68] sm:$0xff]
    %v608 = vld [vmem:[#allocation7 + $0x70] sm:$0xff]
    %v609 = vld [vmem:[#allocation7 + $0x78] sm:$0xff]
    %v610 = vld [vmem:[#allocation7 + $0x80] sm:$0xff]
    %v611 = vld [vmem:[#allocation7 + $0x88] sm:$0xff]
    %v612 = vld [vmem:[#allocation7 + $0x90] sm:$0xff]
    %v613 = vld [vmem:[#allocation7 + $0x98] sm:$0xff]
    %v614 = vld [vmem:[#allocation7 + $0xa0] sm:$0xff]
    %v615 = vld [vmem:[#allocation7 + $0xa8] sm:$0xff]
    %v616 = vld [vmem:[#allocation7 + $0xb0] sm:$0xff]
    %v617 = vld [vmem:[#allocation7 + $0xb8] sm:$0xff]
    %v618 = vld [vmem:[#allocation7 + $0xc0] sm:$0xff]
    %v619 = vld [vmem:[#allocation7 + $0xc8] sm:$0xff]
    %v620 = vld [vmem:[#allocation7 + $0xd0] sm:$0xff]
    %v621 = vld [vmem:[#allocation7 + $0xd8] sm:$0xff]
    %v622 = vld [vmem:[#allocation7 + $0xe0] sm:$0xff]
    %v623 = vld [vmem:[#allocation7 + $0xe8] sm:$0xff]
    %v624 = vld [vmem:[#allocation7 + $0xf0] sm:$0xff]
    %v625 = vld [vmem:[#allocation7 + $0xf8] sm:$0xff]
    %v626 = vld [vmem:[#allocation7 + $0x100] sm:$0xff]
    %v627 = vld [vmem:[#allocation7 + $0x108] sm:$0xff]
    %v628 = vld [vmem:[#allocation7 + $0x110] sm:$0xff]
    %v629 = vld [vmem:[#allocation7 + $0x118] sm:$0xff]
    %v630 = vld [vmem:[#allocation7 + $0x120] sm:$0xff]
    %v631 = vld [vmem:[#allocation7 + $0x128] sm:$0xff]
    %v632 = vld [vmem:[#allocation7 + $0x130] sm:$0xff]
    %v633 = vld [vmem:[#allocation7 + $0x138] sm:$0xff]
    %v634 = vld [vmem:[#allocation7 + $0x140] sm:$0xff]
    %v635 = vld [vmem:[#allocation7 + $0x148] sm:$0xff]
    %v636 = vld [vmem:[#allocation7 + $0x150] sm:$0xff]
    %v637 = vld [vmem:[#allocation7 + $0x158] sm:$0xff]
    %v638 = vld [vmem:[#allocation7 + $0x160] sm:$0xff]
    %v639 = vld [vmem:[#allocation7 + $0x168] sm:$0xff]
    %v640 = vld [vmem:[#allocation7 + $0x170] sm:$0xff]
    %v641 = vld [vmem:[#allocation7 + $0x178] sm:$0xff]
    %v642 = vld [vmem:[#allocation7 + $0x180] sm:$0xff]
    %v643 = vld [vmem:[#allocation7 + $0x188] sm:$0xff]
    %v644 = vld [vmem:[#allocation7 + $0x190] sm:$0xff]
    %v645 = vld [vmem:[#allocation7 + $0x198] sm:$0xff]
    %v646 = vld [vmem:[#allocation7 + $0x1a0] sm:$0xff]
    %v647 = vld [vmem:[#allocation7 + $0x1a8] sm:$0xff]
    %v648 = vld [vmem:[#allocation7 + $0x1b0] sm:$0xff]
    %v649 = vld [vmem:[#allocation7 + $0x1b8] sm:$0xff]
    %v650 = vld [vmem:[#allocation7 + $0x1c0] sm:$0xff]
    %v651 = vld [vmem:[#allocation7 + $0x1c8] sm:$0xff]
    %v652 = vld [vmem:[#allocation7 + $0x1d0] sm:$0xff]
    %v653 = vld [vmem:[#allocation7 + $0x1d8] sm:$0xff]
    %v654 = vld [vmem:[#allocation7 + $0x1e0] sm:$0xff]
    %v655 = vld [vmem:[#allocation7 + $0x1e8] sm:$0xff]
    %v656 = vld [vmem:[#allocation7 + $0x1f0] sm:$0xff]
    %v657 = vld [vmem:[#allocation7 + $0x1f8] sm:$0xff]
    %v722 = vunpack.c.l.b16 %v594
    %v723 = vunpack.c.h.b16 %v594
    %v724 = vunpack.c.l.b16 %v595
    %v725 = vunpack.c.h.b16 %v595
    %v726 = vunpack.c.l.b16 %v596
    %v727 = vunpack.c.h.b16 %v596
    %v728 = vunpack.c.l.b16 %v597
    %v729 = vunpack.c.h.b16 %v597
    %v730 = vunpack.c.l.b16 %v598
    %v731 = vunpack.c.h.b16 %v598
    %v732 = vunpack.c.l.b16 %v599
    %v733 = vunpack.c.h.b16 %v599
    %v734 = vunpack.c.l.b16 %v600
    %v735 = vunpack.c.h.b16 %v600
    %v736 = vunpack.c.l.b16 %v601
    %v737 = vunpack.c.h.b16 %v601
    %v738 = vunpack.c.l.b16 %v602
    %v739 = vunpack.c.h.b16 %v602
    %v740 = vunpack.c.l.b16 %v603
    %v741 = vunpack.c.h.b16 %v603
    %v742 = vunpack.c.l.b16 %v604
    %v743 = vunpack.c.h.b16 %v604
    %v744 = vunpack.c.l.b16 %v605
    %v745 = vunpack.c.h.b16 %v605
    %v746 = vunpack.c.l.b16 %v606
    %v747 = vunpack.c.h.b16 %v606
    %v748 = vunpack.c.l.b16 %v607
    %v749 = vunpack.c.h.b16 %v607
    %v750 = vunpack.c.l.b16 %v608
    %v751 = vunpack.c.h.b16 %v608
    %v752 = vunpack.c.l.b16 %v609
    %v753 = vunpack.c.h.b16 %v609
    %v754 = vunpack.c.l.b16 %v610
    %v755 = vunpack.c.h.b16 %v610
    %v756 = vunpack.c.l.b16 %v611
    %v757 = vunpack.c.h.b16 %v611
    %v758 = vunpack.c.l.b16 %v612
    %v759 = vunpack.c.h.b16 %v612
    %v760 = vunpack.c.l.b16 %v613
    %v761 = vunpack.c.h.b16 %v613
    %v762 = vunpack.c.l.b16 %v614
    %v763 = vunpack.c.h.b16 %v614
    %v764 = vunpack.c.l.b16 %v615
    %v765 = vunpack.c.h.b16 %v615
    %v766 = vunpack.c.l.b16 %v616
    %v767 = vunpack.c.h.b16 %v616
    %v768 = vunpack.c.l.b16 %v617
    %v769 = vunpack.c.h.b16 %v617
    %v770 = vunpack.c.l.b16 %v618
    %v771 = vunpack.c.h.b16 %v618
    %v772 = vunpack.c.l.b16 %v619
    %v773 = vunpack.c.h.b16 %v619
    %v774 = vunpack.c.l.b16 %v620
    %v775 = vunpack.c.h.b16 %v620
    %v776 = vunpack.c.l.b16 %v621
    %v777 = vunpack.c.h.b16 %v621
    %v778 = vunpack.c.l.b16 %v622
    %v779 = vunpack.c.h.b16 %v622
    %v780 = vunpack.c.l.b16 %v623
    %v781 = vunpack.c.h.b16 %v623
    %v782 = vunpack.c.l.b16 %v624
    %v783 = vunpack.c.h.b16 %v624
    %v784 = vunpack.c.l.b16 %v625
    %v785 = vunpack.c.h.b16 %v625
    %v786 = vunpack.c.l.b16 %v626
    %v787 = vunpack.c.h.b16 %v626
    %v788 = vunpack.c.l.b16 %v627
    %v789 = vunpack.c.h.b16 %v627
    %v790 = vunpack.c.l.b16 %v628
    %v791 = vunpack.c.h.b16 %v628
    %v792 = vunpack.c.l.b16 %v629
    %v793 = vunpack.c.h.b16 %v629
    %v794 = vunpack.c.l.b16 %v630
    %v795 = vunpack.c.h.b16 %v630
    %v796 = vunpack.c.l.b16 %v631
    %v797 = vunpack.c.h.b16 %v631
    %v798 = vunpack.c.l.b16 %v632
    %v799 = vunpack.c.h.b16 %v632
    %v800 = vunpack.c.l.b16 %v633
    %v801 = vunpack.c.h.b16 %v633
    %v802 = vunpack.c.l.b16 %v634
    %v803 = vunpack.c.h.b16 %v634
    %v804 = vunpack.c.l.b16 %v635
    %v805 = vunpack.c.h.b16 %v635
    %v806 = vunpack.c.l.b16 %v636
    %v807 = vunpack.c.h.b16 %v636
    %v808 = vunpack.c.l.b16 %v637
    %v809 = vunpack.c.h.b16 %v637
    %v810 = vunpack.c.l.b16 %v638
    %v811 = vunpack.c.h.b16 %v638
    %v812 = vunpack.c.l.b16 %v639
    %v813 = vunpack.c.h.b16 %v639
    %v814 = vunpack.c.l.b16 %v640
    %v815 = vunpack.c.h.b16 %v640
    %v816 = vunpack.c.l.b16 %v641
    %v817 = vunpack.c.h.b16 %v641
    %v818 = vunpack.c.l.b16 %v642
    %v819 = vunpack.c.h.b16 %v642
    %v820 = vunpack.c.l.b16 %v643
    %v821 = vunpack.c.h.b16 %v643
    %v822 = vunpack.c.l.b16 %v644
    %v823 = vunpack.c.h.b16 %v644
    %v824 = vunpack.c.l.b16 %v645
    %v825 = vunpack.c.h.b16 %v645
    %v826 = vunpack.c.l.b16 %v646
    %v827 = vunpack.c.h.b16 %v646
    %v828 = vunpack.c.l.b16 %v647
    %v829 = vunpack.c.h.b16 %v647
    %v830 = vunpack.c.l.b16 %v648
    %v831 = vunpack.c.h.b16 %v648
    %v832 = vunpack.c.l.b16 %v649
    %v833 = vunpack.c.h.b16 %v649
    %v834 = vunpack.c.l.b16 %v650
    %v835 = vunpack.c.h.b16 %v650
    %v836 = vunpack.c.l.b16 %v651
    %v837 = vunpack.c.h.b16 %v651
    %v838 = vunpack.c.l.b16 %v652
    %v839 = vunpack.c.h.b16 %v652
    %v840 = vunpack.c.l.b16 %v653
    %v841 = vunpack.c.h.b16 %v653
    %v842 = vunpack.c.l.b16 %v654
    %v843 = vunpack.c.h.b16 %v654
    %v844 = vunpack.c.l.b16 %v655
    %v845 = vunpack.c.h.b16 %v655
    %v846 = vunpack.c.l.b16 %v656
    %v847 = vunpack.c.h.b16 %v656
    %v848 = vunpack.c.l.b16 %v657
    %v849 = vunpack.c.h.b16 %v657
    %v850 = vpack.c.b16 %v726, %v722
    %v851 = vpack.c.b16 %v727, %v723
    %v852 = vpack.c.b16 %v728, %v724
    %v853 = vpack.c.b16 %v729, %v725
    %v854 = vpack.c.b16 %v734, %v730
    %v855 = vpack.c.b16 %v735, %v731
    %v856 = vpack.c.b16 %v736, %v732
    %v857 = vpack.c.b16 %v737, %v733
    %v858 = vpack.c.b16 %v742, %v738
    %v859 = vpack.c.b16 %v743, %v739
    %v860 = vpack.c.b16 %v744, %v740
    %v861 = vpack.c.b16 %v745, %v741
    %v862 = vpack.c.b16 %v750, %v746
    %v863 = vpack.c.b16 %v751, %v747
    %v864 = vpack.c.b16 %v752, %v748
    %v865 = vpack.c.b16 %v753, %v749
    %v866 = vpack.c.b16 %v758, %v754
    %v867 = vpack.c.b16 %v759, %v755
    %v868 = vpack.c.b16 %v760, %v756
    %v869 = vpack.c.b16 %v761, %v757
    %v870 = vpack.c.b16 %v766, %v762
    %v871 = vpack.c.b16 %v767, %v763
    %v872 = vpack.c.b16 %v768, %v764
    %v873 = vpack.c.b16 %v769, %v765
    %v874 = vpack.c.b16 %v774, %v770
    %v875 = vpack.c.b16 %v775, %v771
    %v876 = vpack.c.b16 %v776, %v772
    %v877 = vpack.c.b16 %v777, %v773
    %v878 = vpack.c.b16 %v782, %v778
    %v879 = vpack.c.b16 %v783, %v779
    %v880 = vpack.c.b16 %v784, %v780
    %v881 = vpack.c.b16 %v785, %v781
    %v882 = vpack.c.b16 %v790, %v786
    %v883 = vpack.c.b16 %v791, %v787
    %v884 = vpack.c.b16 %v792, %v788
    %v885 = vpack.c.b16 %v793, %v789
    %v886 = vpack.c.b16 %v798, %v794
    %v887 = vpack.c.b16 %v799, %v795
    %v888 = vpack.c.b16 %v800, %v796
    %v889 = vpack.c.b16 %v801, %v797
    %v890 = vpack.c.b16 %v806, %v802
    %v891 = vpack.c.b16 %v807, %v803
    %v892 = vpack.c.b16 %v808, %v804
    %v893 = vpack.c.b16 %v809, %v805
    %v894 = vpack.c.b16 %v814, %v810
    %v895 = vpack.c.b16 %v815, %v811
    %v896 = vpack.c.b16 %v816, %v812
    %v897 = vpack.c.b16 %v817, %v813
    %v898 = vpack.c.b16 %v822, %v818
    %v899 = vpack.c.b16 %v823, %v819
    %v900 = vpack.c.b16 %v824, %v820
    %v901 = vpack.c.b16 %v825, %v821
    %v902 = vpack.c.b16 %v830, %v826
    %v903 = vpack.c.b16 %v831, %v827
    %v904 = vpack.c.b16 %v832, %v828
    %v905 = vpack.c.b16 %v833, %v829
    %v906 = vpack.c.b16 %v838, %v834
    %v907 = vpack.c.b16 %v839, %v835
    %v908 = vpack.c.b16 %v840, %v836
    %v909 = vpack.c.b16 %v841, %v837
    %v910 = vpack.c.b16 %v846, %v842
    %v911 = vpack.c.b16 %v847, %v843
    %v912 = vpack.c.b16 %v848, %v844
    %v913 = vpack.c.b16 %v849, %v845
    %978 = vmatprep.subr.bf16.mxu0 %v879
    %979 = vmatpush1.bf16.xpose.msra.mxu0 %v878
    %980 = vmatprep.subr.bf16.mxu0 %v875
    %981 = vmatpush1.bf16.xpose.msra.mxu0 %v874
    %982 = vmatprep.subr.bf16.mxu0 %v871
    %983 = vmatpush1.bf16.xpose.msra.mxu0 %v870
    %984 = vmatprep.subr.bf16.mxu0 %v867
    %985 = vmatpush1.bf16.xpose.msra.mxu0 %v866
    %986 = vmatprep.subr.bf16.mxu0 %v863
    %987 = vmatpush1.bf16.xpose.msra.mxu0 %v862
    %988 = vmatprep.subr.bf16.mxu0 %v859
    %989 = vmatpush1.bf16.xpose.msra.mxu0 %v858
    %990 = vmatprep.subr.bf16.mxu0 %v855
    %991 = vmatpush1.bf16.xpose.msra.mxu0 %v854
    %992 = vmatprep.subr.bf16.mxu0 %v851
    %993 = vmatpush1.bf16.xpose.msra.mxu0 %v850
    %994 = vmatprep.subr.bf16.mxu0 %v911
    %995 = vmatpush2.bf16.xpose.msra.mxu0 %v910
    %996 = vmatprep.subr.bf16.mxu0 %v907
    %997 = vmatpush2.bf16.xpose.msra.mxu0 %v906
    %998 = vmatprep.subr.bf16.mxu0 %v903
    %999 = vmatpush2.bf16.xpose.msra.mxu0 %v902
    %1000 = vmatprep.subr.bf16.mxu0 %v899
    %1001 = vmatpush2.bf16.xpose.msra.mxu0 %v898
    %1002 = vmatprep.subr.bf16.mxu0 %v895
    %1003 = vmatpush2.bf16.xpose.msra.mxu0 %v894
    %1004 = vmatprep.subr.bf16.mxu0 %v891
    %1005 = vmatpush2.bf16.xpose.msra.mxu0 %v890
    %1006 = vmatprep.subr.bf16.mxu0 %v887
    %1007 = vmatpush2.bf16.xpose.msra.mxu0 %v886
    %1008 = vmatprep.subr.bf16.mxu0 %v883
    %1009 = vmatpush2.bf16.xpose.msra.mxu0 %v882
    %1010 = vmatprep.mubr.bf16.mxu0 %v587
    %1011 = vmatmul.mubr.bf16.gmra.mxu0 %v586
    %v1012 = vpop.f32.mrf.mxu0
    %v1013 = vadd.f32 0.0, %v1012
    %v1014 = vpop.f32.mrf.mxu0
    %v1015 = vadd.f32 0.0, %v1014
    %v1016 = vpop.f32.mrf.mxu0
    %v1017 = vadd.f32 0.0, %v1016
    %v1018 = vpop.f32.mrf.mxu0
    %v1019 = vadd.f32 0.0, %v1018
    %1020 = vmatprep.mubr.bf16.mxu0 %v591
    %1021 = vmatmul.mubr.bf16.gmra.mxu0 %v590
    %v1022 = vpop.f32.mrf.mxu0
    %v1023 = vadd.f32 0.0, %v1022
    %v1024 = vpop.f32.mrf.mxu0
    %v1025 = vadd.f32 0.0, %v1024
    %v1026 = vpop.f32.mrf.mxu0
    %v1027 = vadd.f32 0.0, %v1026
    %v1028 = vpop.f32.mrf.mxu0
    %v1029 = vadd.f32 0.0, %v1028
    %1030 = vdwg.mxu0
    %1031 = vmatprep.subr.bf16.mxu0 %v881
    %1032 = vmatpush1.bf16.xpose.msra.mxu0 %v880
    %1033 = vmatprep.subr.bf16.mxu0 %v877
    %1034 = vmatpush1.bf16.xpose.msra.mxu0 %v876
    %1035 = vmatprep.subr.bf16.mxu0 %v873
    %1036 = vmatpush1.bf16.xpose.msra.mxu0 %v872
    %1037 = vmatprep.subr.bf16.mxu0 %v869
    %1038 = vmatpush1.bf16.xpose.msra.mxu0 %v868
    %1039 = vmatprep.subr.bf16.mxu0 %v865
    %1040 = vmatpush1.bf16.xpose.msra.mxu0 %v864
    %1041 = vmatprep.subr.bf16.mxu0 %v861
    %1042 = vmatpush1.bf16.xpose.msra.mxu0 %v860
    %1043 = vmatprep.subr.bf16.mxu0 %v857
    %1044 = vmatpush1.bf16.xpose.msra.mxu0 %v856
    %1045 = vmatprep.subr.bf16.mxu0 %v853
    %1046 = vmatpush1.bf16.xpose.msra.mxu0 %v852
    %1047 = vmatprep.subr.bf16.mxu0 %v913
    %1048 = vmatpush2.bf16.xpose.msra.mxu0 %v912
    %1049 = vmatprep.subr.bf16.mxu0 %v909
    %1050 = vmatpush2.bf16.xpose.msra.mxu0 %v908
    %1051 = vmatprep.subr.bf16.mxu0 %v905
    %1052 = vmatpush2.bf16.xpose.msra.mxu0 %v904
    %1053 = vmatprep.subr.bf16.mxu0 %v901
    %1054 = vmatpush2.bf16.xpose.msra.mxu0 %v900
    %1055 = vmatprep.subr.bf16.mxu0 %v897
    %1056 = vmatpush2.bf16.xpose.msra.mxu0 %v896
    %1057 = vmatprep.subr.bf16.mxu0 %v893
    %1058 = vmatpush2.bf16.xpose.msra.mxu0 %v892
    %1059 = vmatprep.subr.bf16.mxu0 %v889
    %1060 = vmatpush2.bf16.xpose.msra.mxu0 %v888
    %1061 = vmatprep.subr.bf16.mxu0 %v885
    %1062 = vmatpush2.bf16.xpose.msra.mxu0 %v884
    %1063 = vmatprep.mubr.bf16.mxu0 %v589
    %1064 = vmatmul.mubr.bf16.gmra.mxu0 %v588
    %v1065 = vpop.f32.mrf.mxu0
    %v1066 = vadd.f32 %v1013, %v1065
    %v1067 = vpop.f32.mrf.mxu0
    %v1068 = vadd.f32 %v1015, %v1067
    %v1069 = vpop.f32.mrf.mxu0
    %v1070 = vadd.f32 %v1017, %v1069
    %v1071 = vpop.f32.mrf.mxu0
    %v1072 = vadd.f32 %v1019, %v1071
    %1073 = vmatprep.mubr.bf16.mxu0 %v593
    %1074 = vmatmul.mubr.bf16.gmra.mxu0 %v592
    %v1075 = vpop.f32.mrf.mxu0
    %v1076 = vadd.f32 %v1023, %v1075
    %v1077 = vpop.f32.mrf.mxu0
    %v1078 = vadd.f32 %v1025, %v1077
    %v1079 = vpop.f32.mrf.mxu0
    %v1080 = vadd.f32 %v1027, %v1079
    %v1081 = vpop.f32.mrf.mxu0
    %v1082 = vadd.f32 %v1029, %v1081
    %1083 = vdwg.mxu0
    %1084 = vst [vmem:[#allocation8] sm:$0xff] %v1066
    %1085 = vst [vmem:[#allocation8 + $0x8] sm:$0xff] %v1068
    %1086 = vst [vmem:[#allocation8 + $0x10] sm:$0xff] %v1070
    %1087 = vst [vmem:[#allocation8 + $0x18] sm:$0xff] %v1072
    %1088 = vst [vmem:[#allocation8 + $0x20] sm:$0xff] %v1076
    %1089 = vst [vmem:[#allocation8 + $0x28] sm:$0xff] %v1078
    %1090 = vst [vmem:[#allocation8 + $0x30] sm:$0xff] %v1080
    %1091 = vst [vmem:[#allocation8 + $0x38] sm:$0xff] %v1082
    // Predicated region
    $region26: #{tpu_custom_call.1} parent=1 // pred_check
      _
    $region27: #{tpu_custom_call.1} parent=1 // pred_check_branch
      %1093 = sbr.rel (0) target = $region29
    $region28: #{tpu_custom_call.1} parent=1 // pred_region
      %s1095 = ssub.s32 1024, 1024
      %1096 = vsyncadd [#allocation4], %s1095
      %s1097 = sshll.u32 [#allocation8], 4
      %s1098 = int_to_ptr.vmem [resolvable:$true] %s1097
      %1103 = dma.vmem_to_hbm [thread:$0]  %s1098, 1024, %s3, [#allocation4], 256, 256, 16
    $region29: #{tpu_custom_call.1} parent=1 // pred_fallthru
      _
    // Predicated region
    $region30: #{tpu_custom_call.1} parent=1 // pred_check
      _
    $region31: #{tpu_custom_call.1} parent=1 // pred_check_branch
      %1105 = sbr.rel (0) target = $region33
    $region32: #{tpu_custom_call.1} parent=1 // pred_region
      %1106 = dma.done [#allocation4], 1024
    $region33: #{tpu_custom_call.1} parent=1 // pred_fallthru
      _
    %1107 = vsyncpa [#allocation3], 1
    %1108 = vsyncpa [#allocation6], 1
    %1109 = vsyncpa [#allocation4], 1

</llo_original>
